<compile_context>
chip_gen: v7x
topology: tpu7x:2x2x1
jax: 0.10.0
libtpu: 0.0.40
codegen_flags: <defaults>
</compile_context>

<pallas_src>
import functools

import jax
import jax.numpy as jnp
from jax.experimental import pallas as pl
from jax.experimental.pallas import tpu as pltpu


def mlp_kernel(x_ref, w1_ref, b1_ref, w2_ref, b2_ref, o_ref):
    # x_ref : (TB, D_in)      f32  (cast to bf16 here -> no extra HBM pass)
    # w1_ref: (D_in, H_pad)   bf16 (resident)
    # b1_ref: (1, H_pad)      f32  (resident)
    # w2_ref: (H_pad, N_pad)  f32  (resident)
    # b2_ref: (1, N_pad)      f32  (resident)
    # o_ref : (TB, N_pad)     f32
    x = x_ref[...].astype(jnp.bfloat16)
    h = jnp.dot(x, w1_ref[...], preferred_element_type=jnp.float32)
    h = jnp.maximum(h + b1_ref[...], 0.0)            # bias + ReLU in f32 on VPU
    out = jnp.dot(h, w2_ref[...], preferred_element_type=jnp.float32)
    o_ref[...] = (out + b2_ref[...]).astype(o_ref.dtype)


def _round_up(v, m):
    return ((v + m - 1) // m) * m


def _cdiv(a, b):
    return (a + b - 1) // b


@functools.partial(jax.jit, static_argnames=("tile_b",))
def mlp_forward(x, w1, b1, w2, b2, tile_b=2048):
    """x: (B, C, H, W) or (B, D_in). Returns logits (B, output_dim) in f32."""
    B = x.shape[0]
    x2d = x.reshape(B, -1)                       # view-level reshape, no HBM pass
    d_in, hidden = w1.shape
    d_out = w2.shape[1]
    assert x2d.shape[1] == d_in

    f32 = jnp.float32
    bf16 = jnp.bfloat16

    # Lane-aligned hidden / output dims (128 stays 128; 10 -> 128 for dense stores).
    h_pad = _round_up(hidden, 128)
    n_pad = _round_up(max(d_out, 128), 128)

    # Batch tile: big enough to amortize per-step overhead, but capped so the grid
    # has >= 2 steps (v7x megacore sharding) whenever B allows it.  Multiple of 16
    # (bf16 sublane pack).  No batch padding: grid uses cdiv and Pallas clamps the
    # partial last block.
    tb = min(tile_b, max(16, _round_up(_cdiv(B, 2), 16)))
    grid = (_cdiv(B, tb),)

    # Small resident params: cast / lane-pad once (tiny, ~0.3 MB total).
    if h_pad == hidden:
        w1p = w1.astype(bf16)
    else:
        w1p = jnp.zeros((d_in, h_pad), bf16).at[:, :hidden].set(w1.astype(bf16))
    b1p = jnp.zeros((1, h_pad), f32).at[:, :hidden].set(b1.reshape(1, -1).astype(f32))
    w2p = jnp.zeros((h_pad, n_pad), f32).at[:hidden, :d_out].set(w2.astype(f32))
    b2p = jnp.zeros((1, n_pad), f32).at[:, :d_out].set(b2.reshape(1, -1).astype(f32))

    x_bytes = x2d.dtype.itemsize
    flops = 2 * B * (d_in * h_pad + h_pad * n_pad)
    bytes_accessed = (
        B * d_in * x_bytes                       # x streamed
        + w1p.size * 2 + w2p.size * 4            # resident weights (read once)
        + b1p.size * 4 + b2p.size * 4
        + B * n_pad * 4                          # padded logits written
    )

    out = pl.pallas_call(
        mlp_kernel,
        out_shape=jax.ShapeDtypeStruct((B, n_pad), f32),
        grid=grid,
        in_specs=[
            pl.BlockSpec((tb, d_in), lambda i: (i, 0)),      # x: streamed per tile
            pl.BlockSpec((d_in, h_pad), lambda i: (0, 0)),   # w1: resident
            pl.BlockSpec((1, h_pad), lambda i: (0, 0)),      # b1: resident
            pl.BlockSpec((h_pad, n_pad), lambda i: (0, 0)),  # w2: resident
            pl.BlockSpec((1, n_pad), lambda i: (0, 0)),      # b2: resident
        ],
        out_specs=pl.BlockSpec((tb, n_pad), lambda i: (i, 0)),
        compiler_params=pltpu.CompilerParams(
            dimension_semantics=("parallel",),
            # Big double-buffered x tiles (up to ~2K x 784 f32) overrun v5e's
            # 16 MiB scoped default; 48 MiB leaves headroom on every generation
            # (v5e/v6e: 128 MiB physical, v7x: 64 MiB physical).
            vmem_limit_bytes=48 * 1024 * 1024,
        ),
        cost_estimate=pl.CostEstimate(
            flops=flops, transcendentals=0, bytes_accessed=bytes_accessed),
    )(x2d, w1p, b1p, w2p, b2p)

    return out[:, :d_out]


def init_params(key, input_dim=28 * 28, hidden_dim=128, output_dim=10):
    """Deterministic init mirroring nn.Linear's uniform(-1/sqrt(fan_in), 1/sqrt(fan_in))."""
    k1, k2, k3, k4 = jax.random.split(key, 4)
    bound1 = 1.0 / jnp.sqrt(jnp.float32(input_dim))
    bound2 = 1.0 / jnp.sqrt(jnp.float32(hidden_dim))
    # stored as (in, out) so the kernel does x @ W (PyTorch stores (out, in))
    w1 = jax.random.uniform(k1, (input_dim, hidden_dim), jnp.float32, -bound1, bound1)
    b1 = jax.random.uniform(k2, (hidden_dim,), jnp.float32, -bound1, bound1)
    w2 = jax.random.uniform(k3, (hidden_dim, output_dim), jnp.float32, -bound2, bound2)
    b2 = jax.random.uniform(k4, (output_dim,), jnp.float32, -bound2, bound2)
    return w1, b1, w2, b2


if __name__ == "__main__":
    key = jax.random.PRNGKey(0)
    kx, kp = jax.random.split(key)

    # Small MNIST-like batch: (batch=2, channels=1, 28, 28) -> flatten to 784
    x = jax.random.normal(kx, (2, 1, 28, 28), jnp.float32)
    w1, b1, w2, b2 = init_params(kp)

    logits = mlp_forward(x, w1, b1, w2, b2)
    logits = jax.block_until_ready(logits)

    # Pure-JAX reference mirroring the kernel's math:
    #   first matmul with bf16 operands / f32 accumulation, everything else f32.
    x2d = x.reshape(x.shape[0], -1)
    xb = x2d.astype(jnp.bfloat16).astype(jnp.float32)
    w1b = w1.astype(jnp.bfloat16).astype(jnp.float32)
    h_ref = jnp.maximum(xb @ w1b + b1, 0.0)
    ref = h_ref @ w2 + b2

    assert logits.shape == (2, 10), logits.shape
    assert jnp.allclose(logits, ref, atol=1e-2, rtol=1e-2), (
        float(jnp.max(jnp.abs(logits - ref))))

    print("KERNEL_OK")
</pallas_src>

<mosaic_0001>
module attributes {stable_mosaic.version = 11 : i64} {
  func.func @mlp_kernel(%arg0: i32, %arg1: memref<16x784xf32, #tpu.memory_space<vmem>>, %arg2: memref<784x128xbf16, #tpu.memory_space<vmem>>, %arg3: memref<1x128xf32, #tpu.memory_space<vmem>>, %arg4: memref<128x128xf32, #tpu.memory_space<vmem>>, %arg5: memref<1x128xf32, #tpu.memory_space<vmem>>, %arg6: memref<16x128xf32, #tpu.memory_space<vmem>>) attributes {dimension_semantics = [#tpu.dimension_semantics<parallel>], iteration_bounds = array<i64: 1>, scalar_prefetch = 0 : i64, scratch_operands = 0 : i64, tpu.core_type = #tpu.core_type<tc>, window_params = [{transform_indices = @transform_0, window_bounds = array<i64: 16, 784>}, {pipeline_mode = #tpu.pipeline_mode<synchronous>, transform_indices = @transform_1, window_bounds = array<i64: 784, 128>}, {pipeline_mode = #tpu.pipeline_mode<synchronous>, transform_indices = @transform_2, window_bounds = array<i64: 1, 128>}, {pipeline_mode = #tpu.pipeline_mode<synchronous>, transform_indices = @transform_3, window_bounds = array<i64: 128, 128>}, {pipeline_mode = #tpu.pipeline_mode<synchronous>, transform_indices = @transform_4, window_bounds = array<i64: 1, 128>}, {transform_indices = @transform_5, window_bounds = array<i64: 16, 128>}]} {
    %c0 = arith.constant 0 : index
    %c0_0 = arith.constant 0 : index
    %0 = vector.load %arg1[%c0, %c0_0] : memref<16x784xf32, #tpu.memory_space<vmem>>, vector<16x784xf32>
    %1 = arith.truncf %0 : vector<16x784xf32> to vector<16x784xbf16>
    %c0_1 = arith.constant 0 : index
    %c0_2 = arith.constant 0 : index
    %2 = vector.load %arg2[%c0_1, %c0_2] : memref<784x128xbf16, #tpu.memory_space<vmem>>, vector<784x128xbf16>
    %cst = arith.constant dense<0.000000e+00> : vector<16x128xf32>
    %3 = tpu.matmul %1, %2, %cst {dimension_numbers = #tpu.dot_dimension_numbers<[1], [0], [0], [1], [0, 0, 1, 1], [], []>} : vector<16x784xbf16>, vector<784x128xbf16>, vector<16x128xf32> -> vector<16x128xf32>
    %c0_3 = arith.constant 0 : index
    %c0_4 = arith.constant 0 : index
    %4 = vector.load %arg3[%c0_3, %c0_4] : memref<1x128xf32, #tpu.memory_space<vmem>>, vector<1x128xf32>
    %5 = vector.broadcast %4 : vector<1x128xf32> to vector<16x128xf32>
    %6 = arith.addf %3, %5 : vector<16x128xf32>
    %cst_5 = arith.constant 0.000000e+00 : f32
    %7 = vector.broadcast %cst_5 : f32 to vector<16x128xf32>
    %8 = arith.maximumf %6, %7 : vector<16x128xf32>
    %c0_6 = arith.constant 0 : index
    %c0_7 = arith.constant 0 : index
    %9 = vector.load %arg4[%c0_6, %c0_7] : memref<128x128xf32, #tpu.memory_space<vmem>>, vector<128x128xf32>
    %cst_8 = arith.constant dense<0.000000e+00> : vector<16x128xf32>
    %10 = tpu.matmul %8, %9, %cst_8 {dimension_numbers = #tpu.dot_dimension_numbers<[1], [0], [0], [1], [0, 0, 1, 1], [], []>} : vector<16x128xf32>, vector<128x128xf32>, vector<16x128xf32> -> vector<16x128xf32>
    %c0_9 = arith.constant 0 : index
    %c0_10 = arith.constant 0 : index
    %11 = vector.load %arg5[%c0_9, %c0_10] : memref<1x128xf32, #tpu.memory_space<vmem>>, vector<1x128xf32>
    %12 = vector.broadcast %11 : vector<1x128xf32> to vector<16x128xf32>
    %13 = arith.addf %10, %12 : vector<16x128xf32>
    %c0_11 = arith.constant 0 : index
    %c0_12 = arith.constant 0 : index
    %14 = vector.load %arg6[%c0_11, %c0_12] : memref<16x128xf32, #tpu.memory_space<vmem>>, vector<16x128xf32>
    tpu.vector_store %arg6[%c0_11, %c0_12], %13 {strides = array<i32>} : memref<16x128xf32, #tpu.memory_space<vmem>>, vector<16x128xf32>,
    return
  }
  func.func @transform_0(%arg0: i32) -> (i32, i32) {
    %c0_i32 = arith.constant 0 : i32
    %c0_i32_0 = arith.constant 0 : i32
    return %arg0, %c0_i32 : i32, i32
  }
  func.func @transform_1(%arg0: i32) -> (i32, i32) {
    %c0_i32 = arith.constant 0 : i32
    %c0_i32_0 = arith.constant 0 : i32
    %c0_i32_1 = arith.constant 0 : i32
    return %c0_i32, %c0_i32_0 : i32, i32
  }
  func.func @transform_2(%arg0: i32) -> (i32, i32) {
    %c0_i32 = arith.constant 0 : i32
    %c0_i32_0 = arith.constant 0 : i32
    %c0_i32_1 = arith.constant 0 : i32
    return %c0_i32, %c0_i32_0 : i32, i32
  }
  func.func @transform_3(%arg0: i32) -> (i32, i32) {
    %c0_i32 = arith.constant 0 : i32
    %c0_i32_0 = arith.constant 0 : i32
    %c0_i32_1 = arith.constant 0 : i32
    return %c0_i32, %c0_i32_0 : i32, i32
  }
  func.func @transform_4(%arg0: i32) -> (i32, i32) {
    %c0_i32 = arith.constant 0 : i32
    %c0_i32_0 = arith.constant 0 : i32
    %c0_i32_1 = arith.constant 0 : i32
    return %c0_i32, %c0_i32_0 : i32, i32
  }
  func.func @transform_5(%arg0: i32) -> (i32, i32) {
    %c0_i32 = arith.constant 0 : i32
    %c0_i32_0 = arith.constant 0 : i32
    return %arg0, %c0_i32 : i32, i32
  }
}

</mosaic_0001>

<llo_original>
// kernel: mlp_forward.1
$region0: #{mlp_forward.1}
  #allocation0 [shape = 'u32[]', space=smem, size = 0x4, offset = 0x4, fixed_abs, tag = 'smem constant byte address 0x4 - core index']
  #allocation1 [shape = 'u32[144,128]{1,0:T(1,128)}', space=vmem, size = 0x12000, scoped, tag = 'internal scratch']
  %s0 = inlined_call_operand.vmem [shape: f32[2,784], index: 0, kind: input, shape index: {}]
  %s1 = inlined_call_operand.vmem [shape: bf16[784,128], index: 1, kind: input, shape index: {}]
  %s2 = inlined_call_operand.vmem [shape: f32[1,128], index: 2, kind: input, shape index: {}]
  %s3 = inlined_call_operand.vmem [shape: f32[128,128], index: 3, kind: input, shape index: {}]
  %s4 = inlined_call_operand.vmem [shape: f32[1,128], index: 4, kind: input, shape index: {}]
  %s5 = inlined_call_operand.hbm [shape: f32[2,128], index: 5, kind: output, shape index: {}]
  %s6 = sld [smem:[#allocation0]]
  $region30: #{mlp_forward.1} parent=0
    _
  %s8 = ssub.s32 1, %s6
  %s9 = scalar_select 0, %s8, %s6
  $region1: #{mlp_forward.1} parent=0
    #allocation2 [shape = 'u8[8192]{0}', space=vmem, size = 0x2000, scoped, tag = 'output window, operand 0, single buffered']
    #allocation3 [shape = 's32[1]{0}', space=sflag, size = 0x4, scoped, tag = 'scoped memory for mlp_forward.1']
    %10 = vsyncpa [#allocation3], 0
    // Predicated region
    $region2: #{mlp_forward.1} parent=1 // pred_check
      _
    $region3: #{mlp_forward.1} parent=1 // pred_check_branch
      %12 = sbr.rel (0) target = $region5
    $region4: #{mlp_forward.1} parent=1 // pred_region
      _
    $region5: #{mlp_forward.1} parent=1 // pred_fallthru
      _
    // Predicated region
    $region6: #{mlp_forward.1} parent=1 // pred_check
      _
    $region7: #{mlp_forward.1} parent=1 // pred_check_branch
      %14 = sbr.rel (0) target = $region9
    $region8: #{mlp_forward.1} parent=1 // pred_region
      _
    $region9: #{mlp_forward.1} parent=1 // pred_fallthru
      _
    // Predicated region
    $region10: #{mlp_forward.1} parent=1 // pred_check
      _
    $region11: #{mlp_forward.1} parent=1 // pred_check_branch
      %16 = sbr.rel (0) target = $region13
    $region12: #{mlp_forward.1} parent=1 // pred_region
      _
    $region13: #{mlp_forward.1} parent=1 // pred_fallthru
      _
    // Predicated region
    $region14: #{mlp_forward.1} parent=1 // pred_check
      _
    $region15: #{mlp_forward.1} parent=1 // pred_check_branch
      %18 = sbr.rel (0) target = $region17
    $region16: #{mlp_forward.1} parent=1 // pred_region
      _
    $region17: #{mlp_forward.1} parent=1 // pred_fallthru
      _
    // Predicated region
    $region18: #{mlp_forward.1} parent=1 // pred_check
      _
    $region19: #{mlp_forward.1} parent=1 // pred_check_branch
      %20 = sbr.rel (0) target = $region21
    $region20: #{mlp_forward.1} parent=1 // pred_region
      _
    $region21: #{mlp_forward.1} parent=1 // pred_fallthru
      _
    %v22 = vld [vmem:[%s0] sm:$0xff]
    %v23 = vld [vmem:[%s0 + $0x8] sm:$0x3f]
    %v24 = vld [vmem:[%s0 + $0xe] sm:$0xff]
    %v25 = vld [vmem:[%s0 + $0x16] sm:$0x3f]
    %v26 = vld [vmem:[%s0 + $0x1c] sm:$0xff]
    %v27 = vld [vmem:[%s0 + $0x24] sm:$0x3f]
    %v28 = vld [vmem:[%s0 + $0x2a] sm:$0xff]
    %v29 = vld [vmem:[%s0 + $0x32] sm:$0x3f]
    %v30 = vld [vmem:[%s0 + $0x38] sm:$0xff]
    %v31 = vld [vmem:[%s0 + $0x40] sm:$0x3f]
    %v32 = vld [vmem:[%s0 + $0x46] sm:$0xff]
    %v33 = vld [vmem:[%s0 + $0x4e] sm:$0x3f]
    %v34 = vld [vmem:[%s0 + $0x54] sm:$0xff]
    %v35 = vld [vmem:[%s0 + $0x5c] sm:$0x3f]
    %v36 = vld [vmem:[%s0 + $0x62] sm:$0xff]
    %v37 = vld [vmem:[%s0 + $0x6a] sm:$0x3f]
    %v54 = vcombine.low %v22, %v24
    %v55 = vcombine.high %v22, %v24
    %v56 = vcombine.low %v26, %v28
    %v57 = vcombine.high %v26, %v28
    %v59 = vunpack.c.l.s4 1983009808
    %v60 = vunpack.c.0.s8 %v59
    %v61 = vlaneseq
    %v62 = vshrl.u32 %v61, 7
    %v63 = vsub.s32 %v60, %v62
    %v64 = vrot.slane %v54, %v63
    %v66 = vunpack.c.l.s4 1983009808
    %v67 = vunpack.c.0.s8 %v66
    %v68 = vlaneseq
    %v69 = vshrl.u32 %v68, 7
    %v70 = vsub.s32 %v67, %v69
    %v71 = vrot.slane %v55, %v70
    %v73 = vunpack.c.l.s4 1983009808
    %v74 = vunpack.c.0.s8 %v73
    %v75 = vlaneseq
    %v76 = vshrl.u32 %v75, 7
    %v77 = vsub.s32 %v74, %v76
    %v78 = vrot.slane %v56, %v77
    %v80 = vunpack.c.l.s4 1983009808
    %v81 = vunpack.c.0.s8 %v80
    %v82 = vlaneseq
    %v83 = vshrl.u32 %v82, 7
    %v84 = vsub.s32 %v81, %v83
    %v85 = vrot.slane %v57, %v84
    %v86 = vcombine.low %v64, %v78
    %v87 = vcombine.high %v64, %v78
    %v88 = vcombine.low %v71, %v85
    %v89 = vcombine.high %v71, %v85
    %v90 = vcombine.low %v23, %v25
    %v91 = vcombine.high %v23, %v25
    %v92 = vcombine.low %v27, %v29
    %v93 = vcombine.high %v27, %v29
    %v95 = vunpack.c.l.s4 1983009808
    %v96 = vunpack.c.0.s8 %v95
    %v97 = vlaneseq
    %v98 = vshrl.u32 %v97, 7
    %v99 = vsub.s32 %v96, %v98
    %v100 = vrot.slane %v90, %v99
    %v102 = vunpack.c.l.s4 1983009808
    %v103 = vunpack.c.0.s8 %v102
    %v104 = vlaneseq
    %v105 = vshrl.u32 %v104, 7
    %v106 = vsub.s32 %v103, %v105
    %v107 = vrot.slane %v91, %v106
    %v109 = vunpack.c.l.s4 1983009808
    %v110 = vunpack.c.0.s8 %v109
    %v111 = vlaneseq
    %v112 = vshrl.u32 %v111, 7
    %v113 = vsub.s32 %v110, %v112
    %v114 = vrot.slane %v92, %v113
    %v116 = vunpack.c.l.s4 1983009808
    %v117 = vunpack.c.0.s8 %v116
    %v118 = vlaneseq
    %v119 = vshrl.u32 %v118, 7
    %v120 = vsub.s32 %v117, %v119
    %v121 = vrot.slane %v93, %v120
    %v122 = vcombine.low %v100, %v114
    %v123 = vcombine.high %v100, %v114
    %v124 = vcombine.low %v107, %v121
    %v125 = vcombine.low %v30, %v32
    %v126 = vcombine.high %v30, %v32
    %v127 = vcombine.low %v34, %v36
    %v128 = vcombine.high %v34, %v36
    %v130 = vunpack.c.l.s4 1983009808
    %v131 = vunpack.c.0.s8 %v130
    %v132 = vlaneseq
    %v133 = vshrl.u32 %v132, 7
    %v134 = vsub.s32 %v131, %v133
    %v135 = vrot.slane %v125, %v134
    %v137 = vunpack.c.l.s4 1983009808
    %v138 = vunpack.c.0.s8 %v137
    %v139 = vlaneseq
    %v140 = vshrl.u32 %v139, 7
    %v141 = vsub.s32 %v138, %v140
    %v142 = vrot.slane %v126, %v141
    %v144 = vunpack.c.l.s4 1983009808
    %v145 = vunpack.c.0.s8 %v144
    %v146 = vlaneseq
    %v147 = vshrl.u32 %v146, 7
    %v148 = vsub.s32 %v145, %v147
    %v149 = vrot.slane %v127, %v148
    %v151 = vunpack.c.l.s4 1983009808
    %v152 = vunpack.c.0.s8 %v151
    %v153 = vlaneseq
    %v154 = vshrl.u32 %v153, 7
    %v155 = vsub.s32 %v152, %v154
    %v156 = vrot.slane %v128, %v155
    %v157 = vcombine.low %v135, %v149
    %v158 = vcombine.high %v135, %v149
    %v159 = vcombine.low %v142, %v156
    %v160 = vcombine.high %v142, %v156
    %v161 = vcombine.low %v31, %v33
    %v162 = vcombine.high %v31, %v33
    %v163 = vcombine.low %v35, %v37
    %v164 = vcombine.high %v35, %v37
    %v166 = vunpack.c.l.s4 1983009808
    %v167 = vunpack.c.0.s8 %v166
    %v168 = vlaneseq
    %v169 = vshrl.u32 %v168, 7
    %v170 = vsub.s32 %v167, %v169
    %v171 = vrot.slane %v161, %v170
    %v173 = vunpack.c.l.s4 1983009808
    %v174 = vunpack.c.0.s8 %v173
    %v175 = vlaneseq
    %v176 = vshrl.u32 %v175, 7
    %v177 = vsub.s32 %v174, %v176
    %v178 = vrot.slane %v162, %v177
    %v180 = vunpack.c.l.s4 1983009808
    %v181 = vunpack.c.0.s8 %v180
    %v182 = vlaneseq
    %v183 = vshrl.u32 %v182, 7
    %v184 = vsub.s32 %v181, %v183
    %v185 = vrot.slane %v163, %v184
    %v187 = vunpack.c.l.s4 1983009808
    %v188 = vunpack.c.0.s8 %v187
    %v189 = vlaneseq
    %v190 = vshrl.u32 %v189, 7
    %v191 = vsub.s32 %v188, %v190
    %v192 = vrot.slane %v164, %v191
    %v193 = vcombine.low %v171, %v185
    %v194 = vcombine.high %v171, %v185
    %v195 = vcombine.low %v178, %v192
    %v210 = vpack.c.bf16 %v157, %v86
    %v211 = vpack.c.bf16 %v158, %v87
    %v212 = vpack.c.bf16 %v159, %v88
    %v213 = vpack.c.bf16 %v160, %v89
    %v214 = vpack.c.bf16 %v193, %v122
    %v215 = vpack.c.bf16 %v194, %v123
    %v216 = vpack.c.bf16 %v195, %v124
    %v217 = vld [vmem:[%s1] sm:$0xf]
    %v218 = vld [vmem:[%s1 + $0x4] sm:$0xf]
    %v219 = vld [vmem:[%s1 + $0x8] sm:$0xf]
    %v220 = vld [vmem:[%s1 + $0xc] sm:$0xf]
    %v221 = vld [vmem:[%s1 + $0x10] sm:$0xf]
    %v222 = vld [vmem:[%s1 + $0x14] sm:$0xf]
    %v223 = vld [vmem:[%s1 + $0x18] sm:$0xf]
    %v224 = vld [vmem:[%s1 + $0x1c] sm:$0xf]
    %v225 = vld [vmem:[%s1 + $0x20] sm:$0xf]
    %v226 = vld [vmem:[%s1 + $0x24] sm:$0xf]
    %v227 = vld [vmem:[%s1 + $0x28] sm:$0xf]
    %v228 = vld [vmem:[%s1 + $0x2c] sm:$0xf]
    %v229 = vld [vmem:[%s1 + $0x30] sm:$0xf]
    %v230 = vld [vmem:[%s1 + $0x34] sm:$0xf]
    %v231 = vld [vmem:[%s1 + $0x38] sm:$0xf]
    %v232 = vld [vmem:[%s1 + $0x3c] sm:$0xf]
    %v233 = vld [vmem:[%s1 + $0x40] sm:$0xf]
    %v234 = vld [vmem:[%s1 + $0x44] sm:$0xf]
    %v235 = vld [vmem:[%s1 + $0x48] sm:$0xf]
    %v236 = vld [vmem:[%s1 + $0x4c] sm:$0xf]
    %v237 = vld [vmem:[%s1 + $0x50] sm:$0xf]
    %v238 = vld [vmem:[%s1 + $0x54] sm:$0xf]
    %v239 = vld [vmem:[%s1 + $0x58] sm:$0xf]
    %v240 = vld [vmem:[%s1 + $0x5c] sm:$0xf]
    %v241 = vld [vmem:[%s1 + $0x60] sm:$0xf]
    %v242 = vld [vmem:[%s1 + $0x64] sm:$0xf]
    %v243 = vld [vmem:[%s1 + $0x68] sm:$0xf]
    %v244 = vld [vmem:[%s1 + $0x6c] sm:$0xf]
    %v245 = vld [vmem:[%s1 + $0x70] sm:$0xf]
    %v246 = vld [vmem:[%s1 + $0x74] sm:$0xf]
    %v247 = vld [vmem:[%s1 + $0x78] sm:$0xf]
    %v248 = vld [vmem:[%s1 + $0x7c] sm:$0xf]
    %v249 = vld [vmem:[%s1 + $0x80] sm:$0xf]
    %v250 = vld [vmem:[%s1 + $0x84] sm:$0xf]
    %v251 = vld [vmem:[%s1 + $0x88] sm:$0xf]
    %v252 = vld [vmem:[%s1 + $0x8c] sm:$0xf]
    %v253 = vld [vmem:[%s1 + $0x90] sm:$0xf]
    %v254 = vld [vmem:[%s1 + $0x94] sm:$0xf]
    %v255 = vld [vmem:[%s1 + $0x98] sm:$0xf]
    %v256 = vld [vmem:[%s1 + $0x9c] sm:$0xf]
    %v257 = vld [vmem:[%s1 + $0xa0] sm:$0xf]
    %v258 = vld [vmem:[%s1 + $0xa4] sm:$0xf]
    %v259 = vld [vmem:[%s1 + $0xa8] sm:$0xf]
    %v260 = vld [vmem:[%s1 + $0xac] sm:$0xf]
    %v261 = vld [vmem:[%s1 + $0xb0] sm:$0xf]
    %v262 = vld [vmem:[%s1 + $0xb4] sm:$0xf]
    %v263 = vld [vmem:[%s1 + $0xb8] sm:$0xf]
    %v264 = vld [vmem:[%s1 + $0xbc] sm:$0xf]
    %v265 = vld [vmem:[%s1 + $0xc0] sm:$0xf]
    %v266 = vld [vmem:[%s1 + $0xc4] sm:$0xf]
    %v267 = vld [vmem:[%s1 + $0xc8] sm:$0xf]
    %v268 = vld [vmem:[%s1 + $0xcc] sm:$0xf]
    %v269 = vld [vmem:[%s1 + $0xd0] sm:$0xf]
    %v270 = vld [vmem:[%s1 + $0xd4] sm:$0xf]
    %v271 = vld [vmem:[%s1 + $0xd8] sm:$0xf]
    %v272 = vld [vmem:[%s1 + $0xdc] sm:$0xf]
    %v273 = vld [vmem:[%s1 + $0xe0] sm:$0xf]
    %v274 = vld [vmem:[%s1 + $0xe4] sm:$0xf]
    %v275 = vld [vmem:[%s1 + $0xe8] sm:$0xf]
    %v276 = vld [vmem:[%s1 + $0xec] sm:$0xf]
    %v277 = vld [vmem:[%s1 + $0xf0] sm:$0xf]
    %v278 = vld [vmem:[%s1 + $0xf4] sm:$0xf]
    %v279 = vld [vmem:[%s1 + $0xf8] sm:$0xf]
    %v280 = vld [vmem:[%s1 + $0xfc] sm:$0xf]
    %v281 = vld [vmem:[%s1 + $0x100] sm:$0xf]
    %v282 = vld [vmem:[%s1 + $0x104] sm:$0xf]
    %v283 = vld [vmem:[%s1 + $0x108] sm:$0xf]
    %v284 = vld [vmem:[%s1 + $0x10c] sm:$0xf]
    %v285 = vld [vmem:[%s1 + $0x110] sm:$0xf]
    %v286 = vld [vmem:[%s1 + $0x114] sm:$0xf]
    %v287 = vld [vmem:[%s1 + $0x118] sm:$0xf]
    %v288 = vld [vmem:[%s1 + $0x11c] sm:$0xf]
    %v289 = vld [vmem:[%s1 + $0x120] sm:$0xf]
    %v290 = vld [vmem:[%s1 + $0x124] sm:$0xf]
    %v291 = vld [vmem:[%s1 + $0x128] sm:$0xf]
    %v292 = vld [vmem:[%s1 + $0x12c] sm:$0xf]
    %v293 = vld [vmem:[%s1 + $0x130] sm:$0xf]
    %v294 = vld [vmem:[%s1 + $0x134] sm:$0xf]
    %v295 = vld [vmem:[%s1 + $0x138] sm:$0xf]
    %v296 = vld [vmem:[%s1 + $0x13c] sm:$0xf]
    %v297 = vld [vmem:[%s1 + $0x140] sm:$0xf]
    %v298 = vld [vmem:[%s1 + $0x144] sm:$0xf]
    %v299 = vld [vmem:[%s1 + $0x148] sm:$0xf]
    %v300 = vld [vmem:[%s1 + $0x14c] sm:$0xf]
    %v301 = vld [vmem:[%s1 + $0x150] sm:$0xf]
    %v302 = vld [vmem:[%s1 + $0x154] sm:$0xf]
    %v303 = vld [vmem:[%s1 + $0x158] sm:$0xf]
    %v304 = vld [vmem:[%s1 + $0x15c] sm:$0xf]
    %v305 = vld [vmem:[%s1 + $0x160] sm:$0xf]
    %v306 = vld [vmem:[%s1 + $0x164] sm:$0xf]
    %v307 = vld [vmem:[%s1 + $0x168] sm:$0xf]
    %v308 = vld [vmem:[%s1 + $0x16c] sm:$0xf]
    %v309 = vld [vmem:[%s1 + $0x170] sm:$0xf]
    %v310 = vld [vmem:[%s1 + $0x174] sm:$0xf]
    %v311 = vld [vmem:[%s1 + $0x178] sm:$0xf]
    %v312 = vld [vmem:[%s1 + $0x17c] sm:$0xf]
    %v313 = vld [vmem:[%s1 + $0x180] sm:$0xf]
    %v314 = vld [vmem:[%s1 + $0x184] sm:$0xf]
    %v315 = vld [vmem:[%s2] sm:$0x1]
    %v317 = vlaneseq
    %v318 = vshrl.u32 %v317, 7
    %v319 = vsub.s32 0, %v318
    %v320 = vrot.slane %v315, %v319
    %v420 = vunpack.c.l.b16 %v217
    %v421 = vunpack.c.l.b16 %v218
    %v422 = vunpack.c.l.b16 %v219
    %v423 = vunpack.c.l.b16 %v220
    %v424 = vunpack.c.l.b16 %v221
    %v425 = vunpack.c.l.b16 %v222
    %v426 = vunpack.c.l.b16 %v223
    %v427 = vunpack.c.l.b16 %v224
    %v428 = vunpack.c.l.b16 %v225
    %v429 = vunpack.c.l.b16 %v226
    %v430 = vunpack.c.l.b16 %v227
    %v431 = vunpack.c.l.b16 %v228
    %v432 = vunpack.c.l.b16 %v229
    %v433 = vunpack.c.l.b16 %v230
    %v434 = vunpack.c.l.b16 %v231
    %v435 = vunpack.c.l.b16 %v232
    %v436 = vunpack.c.l.b16 %v233
    %v437 = vunpack.c.l.b16 %v234
    %v438 = vunpack.c.l.b16 %v235
    %v439 = vunpack.c.l.b16 %v236
    %v440 = vunpack.c.l.b16 %v237
    %v441 = vunpack.c.l.b16 %v238
    %v442 = vunpack.c.l.b16 %v239
    %v443 = vunpack.c.l.b16 %v240
    %v444 = vunpack.c.l.b16 %v241
    %v445 = vunpack.c.l.b16 %v242
    %v446 = vunpack.c.l.b16 %v243
    %v447 = vunpack.c.l.b16 %v244
    %v448 = vunpack.c.l.b16 %v245
    %v449 = vunpack.c.l.b16 %v246
    %v450 = vunpack.c.l.b16 %v247
    %v451 = vunpack.c.l.b16 %v248
    %v452 = vunpack.c.l.b16 %v249
    %v453 = vunpack.c.l.b16 %v250
    %v454 = vunpack.c.l.b16 %v251
    %v455 = vunpack.c.l.b16 %v252
    %v456 = vunpack.c.l.b16 %v253
    %v457 = vunpack.c.l.b16 %v254
    %v458 = vunpack.c.l.b16 %v255
    %v459 = vunpack.c.l.b16 %v256
    %v460 = vunpack.c.l.b16 %v257
    %v461 = vunpack.c.l.b16 %v258
    %v462 = vunpack.c.l.b16 %v259
    %v463 = vunpack.c.l.b16 %v260
    %v464 = vunpack.c.l.b16 %v261
    %v465 = vunpack.c.l.b16 %v262
    %v466 = vunpack.c.l.b16 %v263
    %v467 = vunpack.c.l.b16 %v264
    %v468 = vunpack.c.l.b16 %v265
    %v469 = vunpack.c.l.b16 %v266
    %v470 = vunpack.c.l.b16 %v267
    %v471 = vunpack.c.l.b16 %v268
    %v472 = vunpack.c.l.b16 %v269
    %v473 = vunpack.c.l.b16 %v270
    %v474 = vunpack.c.l.b16 %v271
    %v475 = vunpack.c.l.b16 %v272
    %v476 = vunpack.c.l.b16 %v273
    %v477 = vunpack.c.l.b16 %v274
    %v478 = vunpack.c.l.b16 %v275
    %v479 = vunpack.c.l.b16 %v276
    %v480 = vunpack.c.l.b16 %v277
    %v481 = vunpack.c.l.b16 %v278
    %v482 = vunpack.c.l.b16 %v279
    %v483 = vunpack.c.l.b16 %v280
    %v484 = vunpack.c.l.b16 %v281
    %v485 = vunpack.c.l.b16 %v282
    %v486 = vunpack.c.l.b16 %v283
    %v487 = vunpack.c.l.b16 %v284
    %v488 = vunpack.c.l.b16 %v285
    %v489 = vunpack.c.l.b16 %v286
    %v490 = vunpack.c.l.b16 %v287
    %v491 = vunpack.c.l.b16 %v288
    %v492 = vunpack.c.l.b16 %v289
    %v493 = vunpack.c.l.b16 %v290
    %v494 = vunpack.c.l.b16 %v291
    %v495 = vunpack.c.l.b16 %v292
    %v496 = vunpack.c.l.b16 %v293
    %v497 = vunpack.c.l.b16 %v294
    %v498 = vunpack.c.l.b16 %v295
    %v499 = vunpack.c.l.b16 %v296
    %v500 = vunpack.c.l.b16 %v297
    %v501 = vunpack.c.l.b16 %v298
    %v502 = vunpack.c.l.b16 %v299
    %v503 = vunpack.c.l.b16 %v300
    %v504 = vunpack.c.l.b16 %v301
    %v505 = vunpack.c.l.b16 %v302
    %v506 = vunpack.c.l.b16 %v303
    %v507 = vunpack.c.l.b16 %v304
    %v508 = vunpack.c.l.b16 %v305
    %v509 = vunpack.c.l.b16 %v306
    %v510 = vunpack.c.l.b16 %v307
    %v511 = vunpack.c.l.b16 %v308
    %v512 = vunpack.c.l.b16 %v309
    %v513 = vunpack.c.l.b16 %v310
    %v514 = vunpack.c.l.b16 %v311
    %v515 = vunpack.c.l.b16 %v312
    %v516 = vunpack.c.l.b16 %v313
    %v517 = vunpack.c.l.b16 %v314
    %v518 = vpack.c.b16 %v421, %v420
    %v519 = vpack.c.b16 %v423, %v422
    %v520 = vpack.c.b16 %v425, %v424
    %v521 = vpack.c.b16 %v427, %v426
    %v522 = vpack.c.b16 %v429, %v428
    %v523 = vpack.c.b16 %v431, %v430
    %v524 = vpack.c.b16 %v433, %v432
    %v525 = vpack.c.b16 %v435, %v434
    %v526 = vpack.c.b16 %v437, %v436
    %v527 = vpack.c.b16 %v439, %v438
    %v528 = vpack.c.b16 %v441, %v440
    %v529 = vpack.c.b16 %v443, %v442
    %v530 = vpack.c.b16 %v445, %v444
    %v531 = vpack.c.b16 %v447, %v446
    %v532 = vpack.c.b16 %v449, %v448
    %v533 = vpack.c.b16 %v451, %v450
    %v534 = vpack.c.b16 %v453, %v452
    %v535 = vpack.c.b16 %v455, %v454
    %v536 = vpack.c.b16 %v457, %v456
    %v537 = vpack.c.b16 %v459, %v458
    %v538 = vpack.c.b16 %v461, %v460
    %v539 = vpack.c.b16 %v463, %v462
    %v540 = vpack.c.b16 %v465, %v464
    %v541 = vpack.c.b16 %v467, %v466
    %v542 = vpack.c.b16 %v469, %v468
    %v543 = vpack.c.b16 %v471, %v470
    %v544 = vpack.c.b16 %v473, %v472
    %v545 = vpack.c.b16 %v475, %v474
    %v546 = vpack.c.b16 %v477, %v476
    %v547 = vpack.c.b16 %v479, %v478
    %v548 = vpack.c.b16 %v481, %v480
    %v549 = vpack.c.b16 %v483, %v482
    %v550 = vpack.c.b16 %v485, %v484
    %v551 = vpack.c.b16 %v487, %v486
    %v552 = vpack.c.b16 %v489, %v488
    %v553 = vpack.c.b16 %v491, %v490
    %v554 = vpack.c.b16 %v493, %v492
    %v555 = vpack.c.b16 %v495, %v494
    %v556 = vpack.c.b16 %v497, %v496
    %v557 = vpack.c.b16 %v499, %v498
    %v558 = vpack.c.b16 %v501, %v500
    %v559 = vpack.c.b16 %v503, %v502
    %v560 = vpack.c.b16 %v505, %v504
    %v561 = vpack.c.b16 %v507, %v506
    %v562 = vpack.c.b16 %v509, %v508
    %v563 = vpack.c.b16 %v511, %v510
    %v564 = vpack.c.b16 %v513, %v512
    %v565 = vpack.c.b16 %v515, %v514
    %v566 = vpack.c.b16 %v517, %v516
    %vm616 = vcmask 130048
    %v618 = vsel %vm616, %v216, 0
    %620 = vmatprep.subr.bf16.mxu0 0
    %621 = vmatpush1.bf16.msra.mxu0 %v518
    %622 = vmatprep.subr.bf16.mxu0 0
    %623 = vmatpush1.bf16.msra.mxu0 %v519
    %624 = vmatprep.subr.bf16.mxu0 0
    %625 = vmatpush1.bf16.msra.mxu0 %v520
    %626 = vmatprep.subr.bf16.mxu0 0
    %627 = vmatpush1.bf16.msra.mxu0 %v521
    %628 = vmatprep.subr.bf16.mxu0 0
    %629 = vmatpush1.bf16.msra.mxu0 %v522
    %630 = vmatprep.subr.bf16.mxu0 0
    %631 = vmatpush1.bf16.msra.mxu0 %v523
    %632 = vmatprep.subr.bf16.mxu0 0
    %633 = vmatpush1.bf16.msra.mxu0 %v524
    %634 = vmatprep.subr.bf16.mxu0 0
    %635 = vmatpush1.bf16.msra.mxu0 %v525
    %636 = vmatprep.subr.bf16.mxu0 0
    %637 = vmatpush1.bf16.msra.mxu0 %v526
    %638 = vmatprep.subr.bf16.mxu0 0
    %639 = vmatpush1.bf16.msra.mxu0 %v527
    %640 = vmatprep.subr.bf16.mxu0 0
    %641 = vmatpush1.bf16.msra.mxu0 %v528
    %642 = vmatprep.subr.bf16.mxu0 0
    %643 = vmatpush1.bf16.msra.mxu0 %v529
    %644 = vmatprep.subr.bf16.mxu0 0
    %645 = vmatpush1.bf16.msra.mxu0 %v530
    %646 = vmatprep.subr.bf16.mxu0 0
    %647 = vmatpush1.bf16.msra.mxu0 %v531
    %648 = vmatprep.subr.bf16.mxu0 0
    %649 = vmatpush1.bf16.msra.mxu0 %v532
    %650 = vmatprep.subr.bf16.mxu0 0
    %651 = vmatpush1.bf16.msra.mxu0 %v533
    %652 = vmatprep.mubr.bf16.mxu0 %v211
    %653 = vmatmul.mubr.bf16.gmra.mrb[0].mxu0 %v210
    %v654 = vpop.f32.mrb[0].mxu0
    %v655 = vadd.f32 %v320, %v654
    %v656 = vpop.f32.mrb[0].mxu0
    %v657 = vpop.f32.mrb[0].mxu0
    %v658 = vadd.f32 %v320, %v657
    %v659 = vpop.f32.mrb[0].mxu0
    %660 = vdwg.mxu0
    %661 = vmatprep.subr.bf16.mxu0 0
    %662 = vmatpush1.bf16.msra.mxu0 %v534
    %663 = vmatprep.subr.bf16.mxu0 0
    %664 = vmatpush1.bf16.msra.mxu0 %v535
    %665 = vmatprep.subr.bf16.mxu0 0
    %666 = vmatpush1.bf16.msra.mxu0 %v536
    %667 = vmatprep.subr.bf16.mxu0 0
    %668 = vmatpush1.bf16.msra.mxu0 %v537
    %669 = vmatprep.subr.bf16.mxu0 0
    %670 = vmatpush1.bf16.msra.mxu0 %v538
    %671 = vmatprep.subr.bf16.mxu0 0
    %672 = vmatpush1.bf16.msra.mxu0 %v539
    %673 = vmatprep.subr.bf16.mxu0 0
    %674 = vmatpush1.bf16.msra.mxu0 %v540
    %675 = vmatprep.subr.bf16.mxu0 0
    %676 = vmatpush1.bf16.msra.mxu0 %v541
    %677 = vmatprep.subr.bf16.mxu0 0
    %678 = vmatpush1.bf16.msra.mxu0 %v542
    %679 = vmatprep.subr.bf16.mxu0 0
    %680 = vmatpush1.bf16.msra.mxu0 %v543
    %681 = vmatprep.subr.bf16.mxu0 0
    %682 = vmatpush1.bf16.msra.mxu0 %v544
    %683 = vmatprep.subr.bf16.mxu0 0
    %684 = vmatpush1.bf16.msra.mxu0 %v545
    %685 = vmatprep.subr.bf16.mxu0 0
    %686 = vmatpush1.bf16.msra.mxu0 %v546
    %687 = vmatprep.subr.bf16.mxu0 0
    %688 = vmatpush1.bf16.msra.mxu0 %v547
    %689 = vmatprep.subr.bf16.mxu0 0
    %690 = vmatpush1.bf16.msra.mxu0 %v548
    %691 = vmatprep.subr.bf16.mxu0 0
    %692 = vmatpush1.bf16.msra.mxu0 %v549
    %693 = vmatprep.mubr.bf16.mxu0 %v213
    %694 = vmatmul.mubr.bf16.gmra.mrb[0].mxu0 %v212
    %v695 = vpop.f32.mrb[0].mxu0
    %v696 = vadd.f32 %v655, %v695
    %v697 = vpop.f32.mrb[0].mxu0
    %v698 = vpop.f32.mrb[0].mxu0
    %v699 = vadd.f32 %v658, %v698
    %v700 = vpop.f32.mrb[0].mxu0
    %701 = vdwg.mxu0
    %702 = vmatprep.subr.bf16.mxu0 0
    %703 = vmatpush1.bf16.msra.mxu0 %v550
    %704 = vmatprep.subr.bf16.mxu0 0
    %705 = vmatpush1.bf16.msra.mxu0 %v551
    %706 = vmatprep.subr.bf16.mxu0 0
    %707 = vmatpush1.bf16.msra.mxu0 %v552
    %708 = vmatprep.subr.bf16.mxu0 0
    %709 = vmatpush1.bf16.msra.mxu0 %v553
    %710 = vmatprep.subr.bf16.mxu0 0
    %711 = vmatpush1.bf16.msra.mxu0 %v554
    %712 = vmatprep.subr.bf16.mxu0 0
    %713 = vmatpush1.bf16.msra.mxu0 %v555
    %714 = vmatprep.subr.bf16.mxu0 0
    %715 = vmatpush1.bf16.msra.mxu0 %v556
    %716 = vmatprep.subr.bf16.mxu0 0
    %717 = vmatpush1.bf16.msra.mxu0 %v557
    %718 = vmatprep.subr.bf16.mxu0 0
    %719 = vmatpush1.bf16.msra.mxu0 %v558
    %720 = vmatprep.subr.bf16.mxu0 0
    %721 = vmatpush1.bf16.msra.mxu0 %v559
    %722 = vmatprep.subr.bf16.mxu0 0
    %723 = vmatpush1.bf16.msra.mxu0 %v560
    %724 = vmatprep.subr.bf16.mxu0 0
    %725 = vmatpush1.bf16.msra.mxu0 %v561
    %726 = vmatprep.subr.bf16.mxu0 0
    %727 = vmatpush1.bf16.msra.mxu0 %v562
    %728 = vmatprep.subr.bf16.mxu0 0
    %729 = vmatpush1.bf16.msra.mxu0 %v563
    %730 = vmatprep.subr.bf16.mxu0 0
    %731 = vmatpush1.bf16.msra.mxu0 %v564
    %732 = vmatprep.subr.bf16.mxu0 0
    %733 = vmatpush1.bf16.msra.mxu0 %v565
    %734 = vmatprep.mubr.bf16.mxu0 %v215
    %735 = vmatmul.mubr.bf16.gmra.mrb[0].mxu0 %v214
    %v736 = vpop.f32.mrb[0].mxu0
    %v737 = vadd.f32 %v696, %v736
    %v738 = vpop.f32.mrb[0].mxu0
    %v739 = vpop.f32.mrb[0].mxu0
    %v740 = vadd.f32 %v699, %v739
    %v741 = vpop.f32.mrb[0].mxu0
    %742 = vdwg.mxu0
    %743 = vmatprep.subr.bf16.mxu0 0
    %744 = vmatpush1.bf16.msra.mxu0 %v566
    %745 = vmatprep.subr.bf16.mxu0 0
    %746 = vmatpush1.bf16.msra.mxu0 0
    %747 = vmatprep.subr.bf16.mxu0 0
    %748 = vmatpush1.bf16.msra.mxu0 0
    %749 = vmatprep.subr.bf16.mxu0 0
    %750 = vmatpush1.bf16.msra.mxu0 0
    %751 = vmatprep.subr.bf16.mxu0 0
    %752 = vmatpush1.bf16.msra.mxu0 0
    %753 = vmatprep.subr.bf16.mxu0 0
    %754 = vmatpush1.bf16.msra.mxu0 0
    %755 = vmatprep.subr.bf16.mxu0 0
    %756 = vmatpush1.bf16.msra.mxu0 0
    %757 = vmatprep.subr.bf16.mxu0 0
    %758 = vmatpush1.bf16.msra.mxu0 0
    %759 = vmatprep.subr.bf16.mxu0 0
    %760 = vmatpush1.bf16.msra.mxu0 0
    %761 = vmatprep.subr.bf16.mxu0 0
    %762 = vmatpush1.bf16.msra.mxu0 0
    %763 = vmatprep.subr.bf16.mxu0 0
    %764 = vmatpush1.bf16.msra.mxu0 0
    %765 = vmatprep.subr.bf16.mxu0 0
    %766 = vmatpush1.bf16.msra.mxu0 0
    %767 = vmatprep.subr.bf16.mxu0 0
    %768 = vmatpush1.bf16.msra.mxu0 0
    %769 = vmatprep.subr.bf16.mxu0 0
    %770 = vmatpush1.bf16.msra.mxu0 0
    %771 = vmatprep.subr.bf16.mxu0 0
    %772 = vmatpush1.bf16.msra.mxu0 0
    %773 = vmatprep.subr.bf16.mxu0 0
    %774 = vmatpush1.bf16.msra.mxu0 0
    %775 = vmatprep.mubr.bf16.mxu0 0
    %776 = vmatmul.mubr.bf16.gmra.mrb[0].mxu0 %v618
    %v777 = vpop.f32.mrb[0].mxu0
    %v778 = vadd.f32 %v737, %v777
    %v779 = vpop.f32.mrb[0].mxu0
    %v780 = vpop.f32.mrb[0].mxu0
    %v781 = vadd.f32 %v740, %v780
    %v782 = vpop.f32.mrb[0].mxu0
    %783 = vdwg.mxu0
    %v784 = vmax.f32 %v778, 0.0
    %v785 = vmax.f32 %v781, 0.0
    %v786 = vld [vmem:[%s3] sm:$0xff]
    %v787 = vld [vmem:[%s3 + $0x8] sm:$0xff]
    %v788 = vld [vmem:[%s3 + $0x10] sm:$0xff]
    %v789 = vld [vmem:[%s3 + $0x18] sm:$0xff]
    %v790 = vld [vmem:[%s3 + $0x20] sm:$0xff]
    %v791 = vld [vmem:[%s3 + $0x28] sm:$0xff]
    %v792 = vld [vmem:[%s3 + $0x30] sm:$0xff]
    %v793 = vld [vmem:[%s3 + $0x38] sm:$0xff]
    %v794 = vld [vmem:[%s3 + $0x40] sm:$0xff]
    %v795 = vld [vmem:[%s3 + $0x48] sm:$0xff]
    %v796 = vld [vmem:[%s3 + $0x50] sm:$0xff]
    %v797 = vld [vmem:[%s3 + $0x58] sm:$0xff]
    %v798 = vld [vmem:[%s3 + $0x60] sm:$0xff]
    %v799 = vld [vmem:[%s3 + $0x68] sm:$0xff]
    %v800 = vld [vmem:[%s3 + $0x70] sm:$0xff]
    %v801 = vld [vmem:[%s3 + $0x78] sm:$0xff]
    %v802 = vld [vmem:[%s4] sm:$0x1]
    %v804 = vlaneseq
    %v805 = vshrl.u32 %v804, 7
    %v806 = vsub.s32 0, %v805
    %v807 = vrot.slane %v802, %v806
    %809 = vmatprep.subr.mxu0 0.0
    %810 = vmatpush1.msra.mxu0 %v786
    %811 = vmatprep.subr.mxu0 0.0
    %812 = vmatpush1.msra.mxu0 %v787
    %813 = vmatprep.subr.mxu0 0.0
    %814 = vmatpush1.msra.mxu0 %v788
    %815 = vmatprep.subr.mxu0 0.0
    %816 = vmatpush1.msra.mxu0 %v789
    %817 = vmatprep.subr.mxu0 0.0
    %818 = vmatpush1.msra.mxu0 %v790
    %819 = vmatprep.subr.mxu0 0.0
    %820 = vmatpush1.msra.mxu0 %v791
    %821 = vmatprep.subr.mxu0 0.0
    %822 = vmatpush1.msra.mxu0 %v792
    %823 = vmatprep.subr.mxu0 0.0
    %824 = vmatpush1.msra.mxu0 %v793
    %825 = vmatprep.subr.mxu0 0.0
    %826 = vmatpush1.msra.mxu0 %v794
    %827 = vmatprep.subr.mxu0 0.0
    %828 = vmatpush1.msra.mxu0 %v795
    %829 = vmatprep.subr.mxu0 0.0
    %830 = vmatpush1.msra.mxu0 %v796
    %831 = vmatprep.subr.mxu0 0.0
    %832 = vmatpush1.msra.mxu0 %v797
    %833 = vmatprep.subr.mxu0 0.0
    %834 = vmatpush1.msra.mxu0 %v798
    %835 = vmatprep.subr.mxu0 0.0
    %836 = vmatpush1.msra.mxu0 %v799
    %837 = vmatprep.subr.mxu0 0.0
    %838 = vmatpush1.msra.mxu0 %v800
    %839 = vmatprep.subr.mxu0 0.0
    %840 = vmatpush1.msra.mxu0 %v801
    %841 = vmatprep.subr.mxu0 0.0
    %842 = vmatpush1.msra.mxu0 0.0
    %843 = vmatprep.subr.mxu0 0.0
    %844 = vmatpush1.msra.mxu0 0.0
    %845 = vmatprep.subr.mxu0 0.0
    %846 = vmatpush1.msra.mxu0 0.0
    %847 = vmatprep.subr.mxu0 0.0
    %848 = vmatpush1.msra.mxu0 0.0
    %849 = vmatprep.subr.mxu0 0.0
    %850 = vmatpush1.msra.mxu0 0.0
    %851 = vmatprep.subr.mxu0 0.0
    %852 = vmatpush1.msra.mxu0 0.0
    %853 = vmatprep.subr.mxu0 0.0
    %854 = vmatpush1.msra.mxu0 0.0
    %855 = vmatprep.subr.mxu0 0.0
    %856 = vmatpush1.msra.mxu0 0.0
    %857 = vmatprep.subr.mxu0 0.0
    %858 = vmatpush1.msra.mxu0 0.0
    %859 = vmatprep.subr.mxu0 0.0
    %860 = vmatpush1.msra.mxu0 0.0
    %861 = vmatprep.subr.mxu0 0.0
    %862 = vmatpush1.msra.mxu0 0.0
    %863 = vmatprep.subr.mxu0 0.0
    %864 = vmatpush1.msra.mxu0 0.0
    %865 = vmatprep.subr.mxu0 0.0
    %866 = vmatpush1.msra.mxu0 0.0
    %867 = vmatprep.subr.mxu0 0.0
    %868 = vmatpush1.msra.mxu0 0.0
    %869 = vmatprep.subr.mxu0 0.0
    %870 = vmatpush1.msra.mxu0 0.0
    %871 = vmatprep.subr.mxu0 0.0
    %872 = vmatpush1.msra.mxu0 0.0
    %873 = vmatprep.mubr.f32.mxu0 0.0
    %874 = vmatmul.mubr.f32.gmra.mrb[0].mxu0 %v784
    %v875 = vpop.f32.mrb[0].mxu0
    %v876 = vadd.f32 %v807, %v875
    %v877 = vpop.f32.mrb[0].mxu0
    %878 = vmatprep.mubr.f32.mxu0 0.0
    %879 = vmatmul.mubr.f32.gmra.mrb[0].mxu0 %v785
    %v880 = vpop.f32.mrb[0].mxu0
    %v881 = vadd.f32 %v807, %v880
    %v882 = vpop.f32.mrb[0].mxu0
    %883 = vdwg.mxu0
    %884 = vst [vmem:[#allocation2] sm:$0xff] %v876
    %885 = vst [vmem:[#allocation2 + $0x8] sm:$0xff] %v881
    // Predicated region
    $region22: #{mlp_forward.1} parent=1 // pred_check
      _
    $region23: #{mlp_forward.1} parent=1 // pred_check_branch
      %887 = sbr.rel (0) target = $region25
    $region24: #{mlp_forward.1} parent=1 // pred_region
      %s889 = ssub.s32 256, 32
      %890 = vsyncadd [#allocation3], %s889
      %s891 = sshll.u32 [#allocation2], 4
      %s892 = int_to_ptr.vmem [resolvable:$true] %s891
      %897 = dma.vmem_to_hbm [thread:$0]  %s892, 32, %s5, [#allocation3], 32, 32, 2
    $region25: #{mlp_forward.1} parent=1 // pred_fallthru
      _
    // Predicated region
    $region26: #{mlp_forward.1} parent=1 // pred_check
      _
    $region27: #{mlp_forward.1} parent=1 // pred_check_branch
      %899 = sbr.rel (0) target = $region29
    $region28: #{mlp_forward.1} parent=1 // pred_region
      %900 = dma.done [#allocation3], 256
    $region29: #{mlp_forward.1} parent=1 // pred_fallthru
      _
    %901 = vsyncpa [#allocation3], 1

</llo_original>
